<compile_context>
chip_gen: v5e
topology: v5e:2x2
jax: 0.10.0
libtpu: 0.0.40
codegen_flags: <defaults>
</compile_context>

<pallas_src>
import jax
import jax.numpy as jnp
from jax.experimental import pallas as pl
from jax.experimental.pallas import tpu as pltpu


# ---------------------------------------------------------------------------
# Fused kernel: conv3x3 (single K=36 matmul) + ReLU + GAP + vision head
#               + text head + fused concat/LLM head
# ---------------------------------------------------------------------------
def fused_multimodal_kernel(patches_ref,   # (B*H*W, 9*C_in)   bf16  im2col slab (tap-major lanes)
                            bio_ref,       # (B, T_in)         bf16
                            conv_w_ref,    # (9*C_in, C_conv)  bf16
                            vis_w_ref,     # (C_conv, V_emb)   bf16
                            txt_w_ref,     # (T_in, T_emb)     bf16
                            llm_wv_ref,    # (V_emb, Out)      bf16  vision half of llm_w
                            llm_wt_ref,    # (T_emb, Out)      bf16  text half of llm_w
                            bias_ref,      # (1, C_conv+V_emb+T_emb+Out) f32 packed biases
                            out_ref):      # (B, Out)          f32
    BHW = patches_ref.shape[0]
    B = bio_ref.shape[0]
    HW = BHW // B
    c_conv = conv_w_ref.shape[-1]
    v_emb = vis_w_ref.shape[-1]
    t_emb = txt_w_ref.shape[-1]
    out_dim = out_ref.shape[-1]

    # --- unpack the single packed bias tensor with static offsets (1 DMA not 4) ---
    bias = bias_ref[...]
    o0 = 0
    conv_b = bias[:, o0:o0 + c_conv]; o0 += c_conv
    vis_b = bias[:, o0:o0 + v_emb];   o0 += v_emb
    txt_b = bias[:, o0:o0 + t_emb];   o0 += t_emb
    llm_b = bias[:, o0:o0 + out_dim]

    # --- 3x3 'same' conv: ONE MXU matmul with K = 9*C_in, f32 accumulation ---
    conv = jnp.dot(patches_ref[...], conv_w_ref[...],
                   preferred_element_type=jnp.float32)            # (BHW, C_conv) f32
    conv = jnp.maximum(conv + conv_b, 0.0)                        # bias + ReLU, VMEM only

    # --- global average pool: f32 sublane reduction (XLU), exact numerics ---
    pooled = conv.reshape(B, HW, c_conv).sum(axis=1) * (1.0 / HW)  # (B, C_conv) f32

    # --- vision head ---
    image_token = jnp.maximum(
        jnp.dot(pooled.astype(jnp.bfloat16), vis_w_ref[...],
                preferred_element_type=jnp.float32) + vis_b, 0.0)

    # --- text head ---
    text_token = jnp.maximum(
        jnp.dot(bio_ref[...], txt_w_ref[...],
                preferred_element_type=jnp.float32) + txt_b, 0.0)

    # --- fused concat + LLM head: [img | txt] @ W == img @ W_v + txt @ W_t ---
    out = (jnp.dot(image_token.astype(jnp.bfloat16), llm_wv_ref[...],
                   preferred_element_type=jnp.float32)
           + jnp.dot(text_token.astype(jnp.bfloat16), llm_wt_ref[...],
                     preferred_element_type=jnp.float32)
           + llm_b)
    out_ref[...] = out.astype(out_ref.dtype)


# ---------------------------------------------------------------------------
# Wrapper: XLA-side layout plumbing (transpose + pad + im2col + bf16 cast
#          + bias packing) + a single pallas_call
# ---------------------------------------------------------------------------
def multimodal_forward(params, images_nchw, biomarkers):
    B, C_in, H, W = images_nchw.shape
    c_conv = params["conv_w"].shape[-1]
    v_emb = params["vis_w"].shape[-1]
    t_emb = params["txt_w"].shape[-1]
    out_dim = params["llm_b"].shape[-1]

    bf16, f32 = jnp.bfloat16, jnp.float32

    # Layout-only work done by XLA, off the kernel critical path.
    x_nhwc = jnp.transpose(images_nchw, (0, 2, 3, 1)).astype(f32)   # NCHW -> NHWC
    x_pad = jnp.pad(x_nhwc, ((0, 0), (1, 1), (1, 1), (0, 0)))       # 'same' padding
    # im2col: concat the 9 shifted windows along the channel (lane) axis, tap-major.
    taps = [x_pad[:, dh:dh + H, dw:dw + W, :]
            for dh in range(3) for dw in range(3)]
    patches = jnp.concatenate(taps, axis=-1)                        # (B, H, W, 9*C_in)
    patches = patches.reshape(B * H * W, 9 * C_in).astype(bf16)     # lane-dense bf16 slab

    # Conv weight tap-major (9, C_in, C_conv) -> (9*C_in, C_conv); matches patch lane order.
    conv_w_flat = params["conv_w"].reshape(9 * C_in, c_conv).astype(bf16)

    # Pack all small f32 biases into one tensor (one DMA, static slices in-kernel).
    bias_packed = jnp.concatenate(
        [params["conv_b"], params["vis_b"], params["txt_b"], params["llm_b"]]
    ).reshape(1, -1).astype(f32)

    args = (
        patches,
        biomarkers.astype(bf16),
        conv_w_flat,
        params["vis_w"].astype(bf16),
        params["txt_w"].astype(bf16),
        params["llm_w"][:v_emb].astype(bf16),    # vision half of fused head
        params["llm_w"][v_emb:].astype(bf16),    # text half of fused head
        bias_packed,
    )
    return pl.pallas_call(
        fused_multimodal_kernel,
        out_shape=jax.ShapeDtypeStruct((B, out_dim), f32),
        in_specs=[pl.BlockSpec(memory_space=pltpu.MemorySpace.VMEM) for _ in args],
        out_specs=pl.BlockSpec(memory_space=pltpu.MemorySpace.VMEM),
    )(*args)


# ---------------------------------------------------------------------------
# Params + pure-JAX reference (f32) for a correctness check
# ---------------------------------------------------------------------------
def init_params(config, key):
    """Deterministic synthetic parameter init (no checkpoint loading)."""
    c_in = config["vision"]["in_channels"]
    c_conv = config["vision"]["conv_channels"]
    v_emb = config["vision"]["embed_dim"]
    t_in = config["text"]["input_dim"]
    t_emb = config["text"]["embed_dim"]
    l_in = config["llm"]["input_dim"]
    l_out = config["llm"]["output_dim"]

    ks = jax.random.split(key, 8)
    scale = 0.05
    return {
        # Conv stored tap-major for the K=9*C_in formulation: (9, C_in, C_conv).
        # NOTE: real PyTorch Conv2d weights (C_out, C_in, kh, kw) must be permuted
        # via w.transpose(2, 3, 1, 0).reshape(9, C_in, C_out) to match this layout.
        "conv_w": scale * jax.random.normal(ks[0], (9, c_in, c_conv), jnp.float32),
        "conv_b": scale * jax.random.normal(ks[1], (c_conv,), jnp.float32),
        "vis_w": scale * jax.random.normal(ks[2], (c_conv, v_emb), jnp.float32),
        "vis_b": scale * jax.random.normal(ks[3], (v_emb,), jnp.float32),
        "txt_w": scale * jax.random.normal(ks[4], (t_in, t_emb), jnp.float32),
        "txt_b": scale * jax.random.normal(ks[5], (t_emb,), jnp.float32),
        "llm_w": scale * jax.random.normal(ks[6], (l_in, l_out), jnp.float32),
        "llm_b": scale * jax.random.normal(ks[7], (l_out,), jnp.float32),
    }


def multimodal_reference(params, images_nchw, biomarkers):
    """Pure-JAX (XLA, f32) reference mirroring the module semantics."""
    B, C, H, W = images_nchw.shape
    x = jnp.transpose(images_nchw, (0, 2, 3, 1)).astype(jnp.float32)
    xp = jnp.pad(x, ((0, 0), (1, 1), (1, 1), (0, 0)))
    c_conv = params["conv_w"].shape[-1]
    acc = jnp.zeros((B, H, W, c_conv), jnp.float32)
    for dh in range(3):
        for dw in range(3):
            acc = acc + jnp.einsum("bhwc,cn->bhwn",
                                   xp[:, dh:dh + H, dw:dw + W, :],
                                   params["conv_w"][dh * 3 + dw])
    conv = jax.nn.relu(acc + params["conv_b"])
    pooled = conv.mean(axis=(1, 2))
    img_tok = jax.nn.relu(pooled @ params["vis_w"] + params["vis_b"])
    txt_tok = jax.nn.relu(biomarkers @ params["txt_w"] + params["txt_b"])
    comb = jnp.concatenate([img_tok, txt_tok], axis=1)
    return comb @ params["llm_w"] + params["llm_b"]


if __name__ == "__main__":
    config = {
        "vision": {"in_channels": 4, "conv_channels": 8, "embed_dim": 16},
        "text": {"input_dim": 8, "embed_dim": 16},
        "llm": {"input_dim": 32, "output_dim": 8},   # 16 (vision) + 16 (text)
    }

    key = jax.random.PRNGKey(0)
    k_img, k_bio, k_par = jax.random.split(key, 3)

    images = jax.random.normal(k_img, (2, 4, 16, 16), jnp.float32)   # NCHW
    biomarkers = jax.random.normal(k_bio, (2, 8), jnp.float32)
    params = init_params(config, k_par)

    out = jax.jit(multimodal_forward)(params, images, biomarkers)
    out = jax.block_until_ready(out)

    assert out.shape == (2, config["llm"]["output_dim"])
    assert bool(jnp.all(jnp.isfinite(out)))

    ref = jax.block_until_ready(multimodal_reference(params, images, biomarkers))
    # bf16 MXU operands vs f32 reference -> loose tolerance.
    assert jnp.allclose(out, ref, atol=1e-2, rtol=1e-1)

    print("KERNEL_OK")
</pallas_src>

<mosaic_0001>
module attributes {stable_mosaic.version = 11 : i64} {
  func.func @fused_multimodal_kernel(%arg0: memref<512x36xbf16, #tpu.memory_space<vmem>>, %arg1: memref<2x8xbf16, #tpu.memory_space<vmem>>, %arg2: memref<36x8xbf16, #tpu.memory_space<vmem>>, %arg3: memref<8x16xbf16, #tpu.memory_space<vmem>>, %arg4: memref<8x16xbf16, #tpu.memory_space<vmem>>, %arg5: memref<16x8xbf16, #tpu.memory_space<vmem>>, %arg6: memref<16x8xbf16, #tpu.memory_space<vmem>>, %arg7: memref<1x48xf32, #tpu.memory_space<vmem>>, %arg8: memref<2x8xf32, #tpu.memory_space<vmem>>) attributes {dimension_semantics = [], scalar_prefetch = 0 : i64, scratch_operands = 0 : i64, tpu.core_type = #tpu.core_type<tc>} {
    %c0 = arith.constant 0 : index
    %c0_0 = arith.constant 0 : index
    %0 = vector.load %arg7[%c0, %c0_0] : memref<1x48xf32, #tpu.memory_space<vmem>>, vector<1x48xf32>
    %1 = vector.extract_strided_slice %0 {offsets = [0, 0], sizes = [1, 8], strides = [1, 1]} : vector<1x48xf32> to vector<1x8xf32>
    %2 = vector.extract_strided_slice %0 {offsets = [0, 8], sizes = [1, 16], strides = [1, 1]} : vector<1x48xf32> to vector<1x16xf32>
    %3 = vector.extract_strided_slice %0 {offsets = [0, 24], sizes = [1, 16], strides = [1, 1]} : vector<1x48xf32> to vector<1x16xf32>
    %4 = vector.extract_strided_slice %0 {offsets = [0, 40], sizes = [1, 8], strides = [1, 1]} : vector<1x48xf32> to vector<1x8xf32>
    %c0_1 = arith.constant 0 : index
    %c0_2 = arith.constant 0 : index
    %5 = vector.load %arg0[%c0_1, %c0_2] : memref<512x36xbf16, #tpu.memory_space<vmem>>, vector<512x36xbf16>
    %c0_3 = arith.constant 0 : index
    %c0_4 = arith.constant 0 : index
    %6 = vector.load %arg2[%c0_3, %c0_4] : memref<36x8xbf16, #tpu.memory_space<vmem>>, vector<36x8xbf16>
    %cst = arith.constant dense<0.000000e+00> : vector<512x8xf32>
    %7 = tpu.matmul %5, %6, %cst {dimension_numbers = #tpu.dot_dimension_numbers<[1], [0], [0], [1], [0, 0, 1, 1], [], []>} : vector<512x36xbf16>, vector<36x8xbf16>, vector<512x8xf32> -> vector<512x8xf32>
    %8 = vector.broadcast %1 : vector<1x8xf32> to vector<512x8xf32>
    %9 = arith.addf %7, %8 : vector<512x8xf32>
    %cst_5 = arith.constant 0.000000e+00 : f32
    %10 = vector.broadcast %cst_5 : f32 to vector<512x8xf32>
    %11 = arith.maximumf %9, %10 : vector<512x8xf32>
    %12 = vector.shape_cast %11 : vector<512x8xf32> to vector<2x256x8xf32>
    %cst_6 = arith.constant dense<0.000000e+00> : vector<2x8xf32>
    %13 = vector.multi_reduction <add>, %12, %cst_6 [1] : vector<2x256x8xf32> to vector<2x8xf32>
    %cst_7 = arith.constant 3.906250e-03 : f32
    %14 = vector.broadcast %cst_7 : f32 to vector<2x8xf32>
    %15 = arith.mulf %13, %14 : vector<2x8xf32>
    %16 = arith.truncf %15 : vector<2x8xf32> to vector<2x8xbf16>
    %c0_8 = arith.constant 0 : index
    %c0_9 = arith.constant 0 : index
    %17 = vector.load %arg3[%c0_8, %c0_9] : memref<8x16xbf16, #tpu.memory_space<vmem>>, vector<8x16xbf16>
    %cst_10 = arith.constant dense<0.000000e+00> : vector<2x16xf32>
    %18 = tpu.matmul %16, %17, %cst_10 {dimension_numbers = #tpu.dot_dimension_numbers<[1], [0], [0], [1], [0, 0, 1, 1], [], []>} : vector<2x8xbf16>, vector<8x16xbf16>, vector<2x16xf32> -> vector<2x16xf32>
    %19 = vector.broadcast %2 : vector<1x16xf32> to vector<2x16xf32>
    %20 = arith.addf %18, %19 : vector<2x16xf32>
    %cst_11 = arith.constant 0.000000e+00 : f32
    %21 = vector.broadcast %cst_11 : f32 to vector<2x16xf32>
    %22 = arith.maximumf %20, %21 : vector<2x16xf32>
    %c0_12 = arith.constant 0 : index
    %c0_13 = arith.constant 0 : index
    %23 = vector.load %arg1[%c0_12, %c0_13] : memref<2x8xbf16, #tpu.memory_space<vmem>>, vector<2x8xbf16>
    %c0_14 = arith.constant 0 : index
    %c0_15 = arith.constant 0 : index
    %24 = vector.load %arg4[%c0_14, %c0_15] : memref<8x16xbf16, #tpu.memory_space<vmem>>, vector<8x16xbf16>
    %cst_16 = arith.constant dense<0.000000e+00> : vector<2x16xf32>
    %25 = tpu.matmul %23, %24, %cst_16 {dimension_numbers = #tpu.dot_dimension_numbers<[1], [0], [0], [1], [0, 0, 1, 1], [], []>} : vector<2x8xbf16>, vector<8x16xbf16>, vector<2x16xf32> -> vector<2x16xf32>
    %26 = vector.broadcast %3 : vector<1x16xf32> to vector<2x16xf32>
    %27 = arith.addf %25, %26 : vector<2x16xf32>
    %cst_17 = arith.constant 0.000000e+00 : f32
    %28 = vector.broadcast %cst_17 : f32 to vector<2x16xf32>
    %29 = arith.maximumf %27, %28 : vector<2x16xf32>
    %30 = arith.truncf %22 : vector<2x16xf32> to vector<2x16xbf16>
    %c0_18 = arith.constant 0 : index
    %c0_19 = arith.constant 0 : index
    %31 = vector.load %arg5[%c0_18, %c0_19] : memref<16x8xbf16, #tpu.memory_space<vmem>>, vector<16x8xbf16>
    %cst_20 = arith.constant dense<0.000000e+00> : vector<2x8xf32>
    %32 = tpu.matmul %30, %31, %cst_20 {dimension_numbers = #tpu.dot_dimension_numbers<[1], [0], [0], [1], [0, 0, 1, 1], [], []>} : vector<2x16xbf16>, vector<16x8xbf16>, vector<2x8xf32> -> vector<2x8xf32>
    %33 = arith.truncf %29 : vector<2x16xf32> to vector<2x16xbf16>
    %c0_21 = arith.constant 0 : index
    %c0_22 = arith.constant 0 : index
    %34 = vector.load %arg6[%c0_21, %c0_22] : memref<16x8xbf16, #tpu.memory_space<vmem>>, vector<16x8xbf16>
    %cst_23 = arith.constant dense<0.000000e+00> : vector<2x8xf32>
    %35 = tpu.matmul %33, %34, %cst_23 {dimension_numbers = #tpu.dot_dimension_numbers<[1], [0], [0], [1], [0, 0, 1, 1], [], []>} : vector<2x16xbf16>, vector<16x8xbf16>, vector<2x8xf32> -> vector<2x8xf32>
    %36 = arith.addf %32, %35 : vector<2x8xf32>
    %37 = vector.broadcast %4 : vector<1x8xf32> to vector<2x8xf32>
    %38 = arith.addf %36, %37 : vector<2x8xf32>
    %c0_24 = arith.constant 0 : index
    %c0_25 = arith.constant 0 : index
    %39 = vector.load %arg8[%c0_24, %c0_25] : memref<2x8xf32, #tpu.memory_space<vmem>>, vector<2x8xf32>
    tpu.vector_store %arg8[%c0_24, %c0_25], %38 {strides = array<i32>} : memref<2x8xf32, #tpu.memory_space<vmem>>, vector<2x8xf32>,
    return
  }
}

</mosaic_0001>

<llo_original>
// kernel: multimodal_forward.1
$region0: #{multimodal_forward.1}
  #allocation0 [shape = 'u32[]', space=smem, size = 0x4, offset = 0x4, fixed_abs, tag = 'smem constant byte address 0x4 - core index']
  #allocation1 [shape = 'u32[72,128]{1,0:T(1,128)}', space=vmem, size = 0x9000, scoped, tag = 'internal scratch']
  %s0 = inlined_call_operand.vmem [shape: bf16[512,36], index: 0, kind: input, shape index: {}]
  %s1 = inlined_call_operand.vmem [shape: bf16[2,8], index: 1, kind: input, shape index: {}]
  %s2 = inlined_call_operand.vmem [shape: bf16[36,8], index: 2, kind: input, shape index: {}]
  %s3 = inlined_call_operand.vmem [shape: bf16[8,16], index: 3, kind: input, shape index: {}]
  %s4 = inlined_call_operand.vmem [shape: bf16[8,16], index: 4, kind: input, shape index: {}]
  %s5 = inlined_call_operand.vmem [shape: bf16[16,8], index: 5, kind: input, shape index: {}]
  %s6 = inlined_call_operand.vmem [shape: bf16[16,8], index: 6, kind: input, shape index: {}]
  %s7 = inlined_call_operand.vmem [shape: f32[1,48], index: 7, kind: input, shape index: {}]
  %s8 = inlined_call_operand.hbm [shape: f32[2,8], index: 8, kind: output, shape index: {}]
  %s9 = sld [smem:[#allocation0]]
  $region42: #{multimodal_forward.1} parent=0
    _
  %s11 = ssub.s32 1, %s9
  %s12 = scalar_select 0, %s11, %s9
  $region1: #{multimodal_forward.1} parent=0
    #allocation2 [shape = 'u8[1024]{0}', space=vmem, size = 0x400, scoped, tag = 'output window, operand 0, single buffered']
    #allocation3 [shape = 's32[1]{0}', space=sflag, size = 0x4, scoped, tag = 'scoped memory for multimodal_forward.1']
    %13 = vsyncpa [#allocation3], 0
    // Predicated region
    $region2: #{multimodal_forward.1} parent=1 // pred_check
      _
    $region3: #{multimodal_forward.1} parent=1 // pred_check_branch
      %15 = sbr.rel (0) target = $region5
    $region4: #{multimodal_forward.1} parent=1 // pred_region
      _
    $region5: #{multimodal_forward.1} parent=1 // pred_fallthru
      _
    // Predicated region
    $region6: #{multimodal_forward.1} parent=1 // pred_check
      _
    $region7: #{multimodal_forward.1} parent=1 // pred_check_branch
      %17 = sbr.rel (0) target = $region9
    $region8: #{multimodal_forward.1} parent=1 // pred_region
      _
    $region9: #{multimodal_forward.1} parent=1 // pred_fallthru
      _
    // Predicated region
    $region10: #{multimodal_forward.1} parent=1 // pred_check
      _
    $region11: #{multimodal_forward.1} parent=1 // pred_check_branch
      %19 = sbr.rel (0) target = $region13
    $region12: #{multimodal_forward.1} parent=1 // pred_region
      _
    $region13: #{multimodal_forward.1} parent=1 // pred_fallthru
      _
    // Predicated region
    $region14: #{multimodal_forward.1} parent=1 // pred_check
      _
    $region15: #{multimodal_forward.1} parent=1 // pred_check_branch
      %21 = sbr.rel (0) target = $region17
    $region16: #{multimodal_forward.1} parent=1 // pred_region
      _
    $region17: #{multimodal_forward.1} parent=1 // pred_fallthru
      _
    // Predicated region
    $region18: #{multimodal_forward.1} parent=1 // pred_check
      _
    $region19: #{multimodal_forward.1} parent=1 // pred_check_branch
      %23 = sbr.rel (0) target = $region21
    $region20: #{multimodal_forward.1} parent=1 // pred_region
      _
    $region21: #{multimodal_forward.1} parent=1 // pred_fallthru
      _
    // Predicated region
    $region22: #{multimodal_forward.1} parent=1 // pred_check
      _
    $region23: #{multimodal_forward.1} parent=1 // pred_check_branch
      %25 = sbr.rel (0) target = $region25
    $region24: #{multimodal_forward.1} parent=1 // pred_region
      _
    $region25: #{multimodal_forward.1} parent=1 // pred_fallthru
      _
    // Predicated region
    $region26: #{multimodal_forward.1} parent=1 // pred_check
      _
    $region27: #{multimodal_forward.1} parent=1 // pred_check_branch
      %27 = sbr.rel (0) target = $region29
    $region28: #{multimodal_forward.1} parent=1 // pred_region
      _
    $region29: #{multimodal_forward.1} parent=1 // pred_fallthru
      _
    // Predicated region
    $region30: #{multimodal_forward.1} parent=1 // pred_check
      _
    $region31: #{multimodal_forward.1} parent=1 // pred_check_branch
      %29 = sbr.rel (0) target = $region33
    $region32: #{multimodal_forward.1} parent=1 // pred_region
      _
    $region33: #{multimodal_forward.1} parent=1 // pred_fallthru
      _
    %v31 = vld [vmem:[%s7] sm:$0x1]
    %v32 = vld [vmem:[%s0] sm:$0xf]
    %v33 = vld [vmem:[%s0 + $0x4] sm:$0xf]
    %v34 = vld [vmem:[%s0 + $0x8] sm:$0xf]
    %v35 = vld [vmem:[%s0 + $0xc] sm:$0xf]
    %v36 = vld [vmem:[%s0 + $0x10] sm:$0xf]
    %v37 = vld [vmem:[%s0 + $0x14] sm:$0xf]
    %v38 = vld [vmem:[%s0 + $0x18] sm:$0xf]
    %v39 = vld [vmem:[%s0 + $0x1c] sm:$0xf]
    %v40 = vld [vmem:[%s0 + $0x20] sm:$0xf]
    %v41 = vld [vmem:[%s0 + $0x24] sm:$0xf]
    %v42 = vld [vmem:[%s0 + $0x28] sm:$0xf]
    %v43 = vld [vmem:[%s0 + $0x2c] sm:$0xf]
    %v44 = vld [vmem:[%s0 + $0x30] sm:$0xf]
    %v45 = vld [vmem:[%s0 + $0x34] sm:$0xf]
    %v46 = vld [vmem:[%s0 + $0x38] sm:$0xf]
    %v47 = vld [vmem:[%s0 + $0x3c] sm:$0xf]
    %v48 = vld [vmem:[%s0 + $0x40] sm:$0xf]
    %v49 = vld [vmem:[%s0 + $0x44] sm:$0xf]
    %v50 = vld [vmem:[%s0 + $0x48] sm:$0xf]
    %v51 = vld [vmem:[%s0 + $0x4c] sm:$0xf]
    %v52 = vld [vmem:[%s0 + $0x50] sm:$0xf]
    %v53 = vld [vmem:[%s0 + $0x54] sm:$0xf]
    %v54 = vld [vmem:[%s0 + $0x58] sm:$0xf]
    %v55 = vld [vmem:[%s0 + $0x5c] sm:$0xf]
    %v56 = vld [vmem:[%s0 + $0x60] sm:$0xf]
    %v57 = vld [vmem:[%s0 + $0x64] sm:$0xf]
    %v58 = vld [vmem:[%s0 + $0x68] sm:$0xf]
    %v59 = vld [vmem:[%s0 + $0x6c] sm:$0xf]
    %v60 = vld [vmem:[%s0 + $0x70] sm:$0xf]
    %v61 = vld [vmem:[%s0 + $0x74] sm:$0xf]
    %v62 = vld [vmem:[%s0 + $0x78] sm:$0xf]
    %v63 = vld [vmem:[%s0 + $0x7c] sm:$0xf]
    %v64 = vld [vmem:[%s0 + $0x80] sm:$0xf]
    %v65 = vld [vmem:[%s0 + $0x84] sm:$0xf]
    %v66 = vld [vmem:[%s0 + $0x88] sm:$0xf]
    %v67 = vld [vmem:[%s0 + $0x8c] sm:$0xf]
    %v68 = vld [vmem:[%s0 + $0x90] sm:$0xf]
    %v69 = vld [vmem:[%s0 + $0x94] sm:$0xf]
    %v70 = vld [vmem:[%s0 + $0x98] sm:$0xf]
    %v71 = vld [vmem:[%s0 + $0x9c] sm:$0xf]
    %v72 = vld [vmem:[%s0 + $0xa0] sm:$0xf]
    %v73 = vld [vmem:[%s0 + $0xa4] sm:$0xf]
    %v74 = vld [vmem:[%s0 + $0xa8] sm:$0xf]
    %v75 = vld [vmem:[%s0 + $0xac] sm:$0xf]
    %v76 = vld [vmem:[%s0 + $0xb0] sm:$0xf]
    %v77 = vld [vmem:[%s0 + $0xb4] sm:$0xf]
    %v78 = vld [vmem:[%s0 + $0xb8] sm:$0xf]
    %v79 = vld [vmem:[%s0 + $0xbc] sm:$0xf]
    %v80 = vld [vmem:[%s0 + $0xc0] sm:$0xf]
    %v81 = vld [vmem:[%s0 + $0xc4] sm:$0xf]
    %v82 = vld [vmem:[%s0 + $0xc8] sm:$0xf]
    %v83 = vld [vmem:[%s0 + $0xcc] sm:$0xf]
    %v84 = vld [vmem:[%s0 + $0xd0] sm:$0xf]
    %v85 = vld [vmem:[%s0 + $0xd4] sm:$0xf]
    %v86 = vld [vmem:[%s0 + $0xd8] sm:$0xf]
    %v87 = vld [vmem:[%s0 + $0xdc] sm:$0xf]
    %v88 = vld [vmem:[%s0 + $0xe0] sm:$0xf]
    %v89 = vld [vmem:[%s0 + $0xe4] sm:$0xf]
    %v90 = vld [vmem:[%s0 + $0xe8] sm:$0xf]
    %v91 = vld [vmem:[%s0 + $0xec] sm:$0xf]
    %v92 = vld [vmem:[%s0 + $0xf0] sm:$0xf]
    %v93 = vld [vmem:[%s0 + $0xf4] sm:$0xf]
    %v94 = vld [vmem:[%s0 + $0xf8] sm:$0xf]
    %v95 = vld [vmem:[%s0 + $0xfc] sm:$0xf]
    %v96 = vld [vmem:[%s2] sm:$0xf]
    %v97 = vld [vmem:[%s2 + $0x4] sm:$0xf]
    %v98 = vld [vmem:[%s2 + $0x8] sm:$0xf]
    %v99 = vld [vmem:[%s2 + $0xc] sm:$0xf]
    %v100 = vld [vmem:[%s2 + $0x10] sm:$0x3]
    %v102 = vperm.slane %v31, 0
    %v168 = vunpack.c.l.b16 %v32
    %v169 = vunpack.c.l.b16 %v33
    %v170 = vunpack.c.l.b16 %v34
    %v171 = vunpack.c.l.b16 %v35
    %v172 = vunpack.c.l.b16 %v36
    %v173 = vunpack.c.l.b16 %v37
    %v174 = vunpack.c.l.b16 %v38
    %v175 = vunpack.c.l.b16 %v39
    %v176 = vunpack.c.l.b16 %v40
    %v177 = vunpack.c.l.b16 %v41
    %v178 = vunpack.c.l.b16 %v42
    %v179 = vunpack.c.l.b16 %v43
    %v180 = vunpack.c.l.b16 %v44
    %v181 = vunpack.c.l.b16 %v45
    %v182 = vunpack.c.l.b16 %v46
    %v183 = vunpack.c.l.b16 %v47
    %v184 = vunpack.c.l.b16 %v48
    %v185 = vunpack.c.l.b16 %v49
    %v186 = vunpack.c.l.b16 %v50
    %v187 = vunpack.c.l.b16 %v51
    %v188 = vunpack.c.l.b16 %v52
    %v189 = vunpack.c.l.b16 %v53
    %v190 = vunpack.c.l.b16 %v54
    %v191 = vunpack.c.l.b16 %v55
    %v192 = vunpack.c.l.b16 %v56
    %v193 = vunpack.c.l.b16 %v57
    %v194 = vunpack.c.l.b16 %v58
    %v195 = vunpack.c.l.b16 %v59
    %v196 = vunpack.c.l.b16 %v60
    %v197 = vunpack.c.l.b16 %v61
    %v198 = vunpack.c.l.b16 %v62
    %v199 = vunpack.c.l.b16 %v63
    %v200 = vunpack.c.l.b16 %v64
    %v201 = vunpack.c.l.b16 %v65
    %v202 = vunpack.c.l.b16 %v66
    %v203 = vunpack.c.l.b16 %v67
    %v204 = vunpack.c.l.b16 %v68
    %v205 = vunpack.c.l.b16 %v69
    %v206 = vunpack.c.l.b16 %v70
    %v207 = vunpack.c.l.b16 %v71
    %v208 = vunpack.c.l.b16 %v72
    %v209 = vunpack.c.l.b16 %v73
    %v210 = vunpack.c.l.b16 %v74
    %v211 = vunpack.c.l.b16 %v75
    %v212 = vunpack.c.l.b16 %v76
    %v213 = vunpack.c.l.b16 %v77
    %v214 = vunpack.c.l.b16 %v78
    %v215 = vunpack.c.l.b16 %v79
    %v216 = vunpack.c.l.b16 %v80
    %v217 = vunpack.c.l.b16 %v81
    %v218 = vunpack.c.l.b16 %v82
    %v219 = vunpack.c.l.b16 %v83
    %v220 = vunpack.c.l.b16 %v84
    %v221 = vunpack.c.l.b16 %v85
    %v222 = vunpack.c.l.b16 %v86
    %v223 = vunpack.c.l.b16 %v87
    %v224 = vunpack.c.l.b16 %v88
    %v225 = vunpack.c.l.b16 %v89
    %v226 = vunpack.c.l.b16 %v90
    %v227 = vunpack.c.l.b16 %v91
    %v228 = vunpack.c.l.b16 %v92
    %v229 = vunpack.c.l.b16 %v93
    %v230 = vunpack.c.l.b16 %v94
    %v231 = vunpack.c.l.b16 %v95
    %v232 = vpack.c.b16 %v169, %v168
    %v233 = vpack.c.b16 %v171, %v170
    %v234 = vpack.c.b16 %v173, %v172
    %v235 = vpack.c.b16 %v175, %v174
    %v236 = vpack.c.b16 %v177, %v176
    %v237 = vpack.c.b16 %v179, %v178
    %v238 = vpack.c.b16 %v181, %v180
    %v239 = vpack.c.b16 %v183, %v182
    %v240 = vpack.c.b16 %v185, %v184
    %v241 = vpack.c.b16 %v187, %v186
    %v242 = vpack.c.b16 %v189, %v188
    %v243 = vpack.c.b16 %v191, %v190
    %v244 = vpack.c.b16 %v193, %v192
    %v245 = vpack.c.b16 %v195, %v194
    %v246 = vpack.c.b16 %v197, %v196
    %v247 = vpack.c.b16 %v199, %v198
    %v248 = vpack.c.b16 %v201, %v200
    %v249 = vpack.c.b16 %v203, %v202
    %v250 = vpack.c.b16 %v205, %v204
    %v251 = vpack.c.b16 %v207, %v206
    %v252 = vpack.c.b16 %v209, %v208
    %v253 = vpack.c.b16 %v211, %v210
    %v254 = vpack.c.b16 %v213, %v212
    %v255 = vpack.c.b16 %v215, %v214
    %v256 = vpack.c.b16 %v217, %v216
    %v257 = vpack.c.b16 %v219, %v218
    %v258 = vpack.c.b16 %v221, %v220
    %v259 = vpack.c.b16 %v223, %v222
    %v260 = vpack.c.b16 %v225, %v224
    %v261 = vpack.c.b16 %v227, %v226
    %v262 = vpack.c.b16 %v229, %v228
    %v263 = vpack.c.b16 %v231, %v230
    %v269 = vunpack.c.l.b16 %v96
    %v270 = vunpack.c.l.b16 %v97
    %v271 = vunpack.c.l.b16 %v98
    %v272 = vunpack.c.l.b16 %v99
    %v273 = vunpack.c.l.b16 %v100
    %v274 = vpack.c.b16 %v270, %v269
    %v275 = vpack.c.b16 %v272, %v271
    %v276 = vpack.c.b16 %v273, %v273
    %vm279 = vcmask 293888
    %v281 = vsel %vm279, %v232, 0
    %v284 = vsel %vm279, %v233, 0
    %v287 = vsel %vm279, %v234, 0
    %v290 = vsel %vm279, %v235, 0
    %v293 = vsel %vm279, %v236, 0
    %v296 = vsel %vm279, %v237, 0
    %v299 = vsel %vm279, %v238, 0
    %v302 = vsel %vm279, %v239, 0
    %v305 = vsel %vm279, %v240, 0
    %v308 = vsel %vm279, %v241, 0
    %v311 = vsel %vm279, %v242, 0
    %v314 = vsel %vm279, %v243, 0
    %v317 = vsel %vm279, %v244, 0
    %v320 = vsel %vm279, %v245, 0
    %v323 = vsel %vm279, %v246, 0
    %v326 = vsel %vm279, %v247, 0
    %v329 = vsel %vm279, %v248, 0
    %v332 = vsel %vm279, %v249, 0
    %v335 = vsel %vm279, %v250, 0
    %v338 = vsel %vm279, %v251, 0
    %v341 = vsel %vm279, %v252, 0
    %v344 = vsel %vm279, %v253, 0
    %v347 = vsel %vm279, %v254, 0
    %v350 = vsel %vm279, %v255, 0
    %v353 = vsel %vm279, %v256, 0
    %v356 = vsel %vm279, %v257, 0
    %v359 = vsel %vm279, %v258, 0
    %v362 = vsel %vm279, %v259, 0
    %v365 = vsel %vm279, %v260, 0
    %v368 = vsel %vm279, %v261, 0
    %v371 = vsel %vm279, %v262, 0
    %v374 = vsel %vm279, %v263, 0
    %vm376 = vcmask 1041408
    %v378 = vsel %vm376, %v276, 0
    %380 = vmatpush.bf16.msra.mxu0 0
    %381 = vmatpush.bf16.msra.mxu0 0
    %382 = vmatpush.bf16.msra.mxu0 0
    %383 = vmatpush.bf16.msra.mxu0 0
    %384 = vmatpush.bf16.msra.mxu0 0
    %385 = vmatpush.bf16.msra.mxu0 %v378
    %386 = vmatpush.bf16.msra.mxu0 %v275
    %387 = vmatpush.bf16.msra.mxu0 %v274
    %388 = vmatmul.bf16.gmra.mxu0 %v281
    %v389 = vpop.f32.mrf.mxu0
    %v390 = vadd.f32 %v102, %v389
    %v391 = vpop.f32.mrf.mxu0
    %v392 = vadd.f32 %v102, %v391
    %393 = vmatmul.bf16.gmra.mxu0 %v284
    %v394 = vpop.f32.mrf.mxu0
    %v395 = vadd.f32 %v102, %v394
    %v396 = vpop.f32.mrf.mxu0
    %v397 = vadd.f32 %v102, %v396
    %398 = vmatmul.bf16.gmra.mxu0 %v287
    %v399 = vpop.f32.mrf.mxu0
    %v400 = vadd.f32 %v102, %v399
    %v401 = vpop.f32.mrf.mxu0
    %v402 = vadd.f32 %v102, %v401
    %403 = vmatmul.bf16.gmra.mxu0 %v290
    %v404 = vpop.f32.mrf.mxu0
    %v405 = vadd.f32 %v102, %v404
    %v406 = vpop.f32.mrf.mxu0
    %v407 = vadd.f32 %v102, %v406
    %408 = vmatmul.bf16.gmra.mxu0 %v293
    %v409 = vpop.f32.mrf.mxu0
    %v410 = vadd.f32 %v102, %v409
    %v411 = vpop.f32.mrf.mxu0
    %v412 = vadd.f32 %v102, %v411
    %413 = vmatmul.bf16.gmra.mxu0 %v296
    %v414 = vpop.f32.mrf.mxu0
    %v415 = vadd.f32 %v102, %v414
    %v416 = vpop.f32.mrf.mxu0
    %v417 = vadd.f32 %v102, %v416
    %418 = vmatmul.bf16.gmra.mxu0 %v299
    %v419 = vpop.f32.mrf.mxu0
    %v420 = vadd.f32 %v102, %v419
    %v421 = vpop.f32.mrf.mxu0
    %v422 = vadd.f32 %v102, %v421
    %423 = vmatmul.bf16.gmra.mxu0 %v302
    %v424 = vpop.f32.mrf.mxu0
    %v425 = vadd.f32 %v102, %v424
    %v426 = vpop.f32.mrf.mxu0
    %v427 = vadd.f32 %v102, %v426
    %428 = vmatmul.bf16.gmra.mxu0 %v305
    %v429 = vpop.f32.mrf.mxu0
    %v430 = vadd.f32 %v102, %v429
    %v431 = vpop.f32.mrf.mxu0
    %v432 = vadd.f32 %v102, %v431
    %433 = vmatmul.bf16.gmra.mxu0 %v308
    %v434 = vpop.f32.mrf.mxu0
    %v435 = vadd.f32 %v102, %v434
    %v436 = vpop.f32.mrf.mxu0
    %v437 = vadd.f32 %v102, %v436
    %438 = vmatmul.bf16.gmra.mxu0 %v311
    %v439 = vpop.f32.mrf.mxu0
    %v440 = vadd.f32 %v102, %v439
    %v441 = vpop.f32.mrf.mxu0
    %v442 = vadd.f32 %v102, %v441
    %443 = vmatmul.bf16.gmra.mxu0 %v314
    %v444 = vpop.f32.mrf.mxu0
    %v445 = vadd.f32 %v102, %v444
    %v446 = vpop.f32.mrf.mxu0
    %v447 = vadd.f32 %v102, %v446
    %448 = vmatmul.bf16.gmra.mxu0 %v317
    %v449 = vpop.f32.mrf.mxu0
    %v450 = vadd.f32 %v102, %v449
    %v451 = vpop.f32.mrf.mxu0
    %v452 = vadd.f32 %v102, %v451
    %453 = vmatmul.bf16.gmra.mxu0 %v320
    %v454 = vpop.f32.mrf.mxu0
    %v455 = vadd.f32 %v102, %v454
    %v456 = vpop.f32.mrf.mxu0
    %v457 = vadd.f32 %v102, %v456
    %458 = vmatmul.bf16.gmra.mxu0 %v323
    %v459 = vpop.f32.mrf.mxu0
    %v460 = vadd.f32 %v102, %v459
    %v461 = vpop.f32.mrf.mxu0
    %v462 = vadd.f32 %v102, %v461
    %463 = vmatmul.bf16.gmra.mxu0 %v326
    %v464 = vpop.f32.mrf.mxu0
    %v465 = vadd.f32 %v102, %v464
    %v466 = vpop.f32.mrf.mxu0
    %v467 = vadd.f32 %v102, %v466
    %468 = vmatmul.bf16.gmra.mxu0 %v329
    %v469 = vpop.f32.mrf.mxu0
    %v470 = vadd.f32 %v102, %v469
    %v471 = vpop.f32.mrf.mxu0
    %v472 = vadd.f32 %v102, %v471
    %473 = vmatmul.bf16.gmra.mxu0 %v332
    %v474 = vpop.f32.mrf.mxu0
    %v475 = vadd.f32 %v102, %v474
    %v476 = vpop.f32.mrf.mxu0
    %v477 = vadd.f32 %v102, %v476
    %478 = vmatmul.bf16.gmra.mxu0 %v335
    %v479 = vpop.f32.mrf.mxu0
    %v480 = vadd.f32 %v102, %v479
    %v481 = vpop.f32.mrf.mxu0
    %v482 = vadd.f32 %v102, %v481
    %483 = vmatmul.bf16.gmra.mxu0 %v338
    %v484 = vpop.f32.mrf.mxu0
    %v485 = vadd.f32 %v102, %v484
    %v486 = vpop.f32.mrf.mxu0
    %v487 = vadd.f32 %v102, %v486
    %488 = vmatmul.bf16.gmra.mxu0 %v341
    %v489 = vpop.f32.mrf.mxu0
    %v490 = vadd.f32 %v102, %v489
    %v491 = vpop.f32.mrf.mxu0
    %v492 = vadd.f32 %v102, %v491
    %493 = vmatmul.bf16.gmra.mxu0 %v344
    %v494 = vpop.f32.mrf.mxu0
    %v495 = vadd.f32 %v102, %v494
    %v496 = vpop.f32.mrf.mxu0
    %v497 = vadd.f32 %v102, %v496
    %498 = vmatmul.bf16.gmra.mxu0 %v347
    %v499 = vpop.f32.mrf.mxu0
    %v500 = vadd.f32 %v102, %v499
    %v501 = vpop.f32.mrf.mxu0
    %v502 = vadd.f32 %v102, %v501
    %503 = vmatmul.bf16.gmra.mxu0 %v350
    %v504 = vpop.f32.mrf.mxu0
    %v505 = vadd.f32 %v102, %v504
    %v506 = vpop.f32.mrf.mxu0
    %v507 = vadd.f32 %v102, %v506
    %508 = vmatmul.bf16.gmra.mxu0 %v353
    %v509 = vpop.f32.mrf.mxu0
    %v510 = vadd.f32 %v102, %v509
    %v511 = vpop.f32.mrf.mxu0
    %v512 = vadd.f32 %v102, %v511
    %513 = vmatmul.bf16.gmra.mxu0 %v356
    %v514 = vpop.f32.mrf.mxu0
    %v515 = vadd.f32 %v102, %v514
    %v516 = vpop.f32.mrf.mxu0
    %v517 = vadd.f32 %v102, %v516
    %518 = vmatmul.bf16.gmra.mxu0 %v359
    %v519 = vpop.f32.mrf.mxu0
    %v520 = vadd.f32 %v102, %v519
    %v521 = vpop.f32.mrf.mxu0
    %v522 = vadd.f32 %v102, %v521
    %523 = vmatmul.bf16.gmra.mxu0 %v362
    %v524 = vpop.f32.mrf.mxu0
    %v525 = vadd.f32 %v102, %v524
    %v526 = vpop.f32.mrf.mxu0
    %v527 = vadd.f32 %v102, %v526
    %528 = vmatmul.bf16.gmra.mxu0 %v365
    %v529 = vpop.f32.mrf.mxu0
    %v530 = vadd.f32 %v102, %v529
    %v531 = vpop.f32.mrf.mxu0
    %v532 = vadd.f32 %v102, %v531
    %533 = vmatmul.bf16.gmra.mxu0 %v368
    %v534 = vpop.f32.mrf.mxu0
    %v535 = vadd.f32 %v102, %v534
    %v536 = vpop.f32.mrf.mxu0
    %v537 = vadd.f32 %v102, %v536
    %538 = vmatmul.bf16.gmra.mxu0 %v371
    %v539 = vpop.f32.mrf.mxu0
    %v540 = vadd.f32 %v102, %v539
    %v541 = vpop.f32.mrf.mxu0
    %v542 = vadd.f32 %v102, %v541
    %543 = vmatmul.bf16.gmra.mxu0 %v374
    %v544 = vpop.f32.mrf.mxu0
    %v545 = vadd.f32 %v102, %v544
    %v546 = vpop.f32.mrf.mxu0
    %v547 = vadd.f32 %v102, %v546
    %548 = vdwg.mxu0
    %v549 = vmax.f32 %v390, 0.0
    %v550 = vmax.f32 %v392, 0.0
    %v551 = vmax.f32 %v395, 0.0
    %v552 = vmax.f32 %v397, 0.0
    %v553 = vmax.f32 %v400, 0.0
    %v554 = vmax.f32 %v402, 0.0
    %v555 = vmax.f32 %v405, 0.0
    %v556 = vmax.f32 %v407, 0.0
    %v557 = vmax.f32 %v410, 0.0
    %v558 = vmax.f32 %v412, 0.0
    %v559 = vmax.f32 %v415, 0.0
    %v560 = vmax.f32 %v417, 0.0
    %v561 = vmax.f32 %v420, 0.0
    %v562 = vmax.f32 %v422, 0.0
    %v563 = vmax.f32 %v425, 0.0
    %v564 = vmax.f32 %v427, 0.0
    %v565 = vmax.f32 %v430, 0.0
    %v566 = vmax.f32 %v432, 0.0
    %v567 = vmax.f32 %v435, 0.0
    %v568 = vmax.f32 %v437, 0.0
    %v569 = vmax.f32 %v440, 0.0
    %v570 = vmax.f32 %v442, 0.0
    %v571 = vmax.f32 %v445, 0.0
    %v572 = vmax.f32 %v447, 0.0
    %v573 = vmax.f32 %v450, 0.0
    %v574 = vmax.f32 %v452, 0.0
    %v575 = vmax.f32 %v455, 0.0
    %v576 = vmax.f32 %v457, 0.0
    %v577 = vmax.f32 %v460, 0.0
    %v578 = vmax.f32 %v462, 0.0
    %v579 = vmax.f32 %v465, 0.0
    %v580 = vmax.f32 %v467, 0.0
    %v581 = vmax.f32 %v470, 0.0
    %v582 = vmax.f32 %v472, 0.0
    %v583 = vmax.f32 %v475, 0.0
    %v584 = vmax.f32 %v477, 0.0
    %v585 = vmax.f32 %v480, 0.0
    %v586 = vmax.f32 %v482, 0.0
    %v587 = vmax.f32 %v485, 0.0
    %v588 = vmax.f32 %v487, 0.0
    %v589 = vmax.f32 %v490, 0.0
    %v590 = vmax.f32 %v492, 0.0
    %v591 = vmax.f32 %v495, 0.0
    %v592 = vmax.f32 %v497, 0.0
    %v593 = vmax.f32 %v500, 0.0
    %v594 = vmax.f32 %v502, 0.0
    %v595 = vmax.f32 %v505, 0.0
    %v596 = vmax.f32 %v507, 0.0
    %v597 = vmax.f32 %v510, 0.0
    %v598 = vmax.f32 %v512, 0.0
    %v599 = vmax.f32 %v515, 0.0
    %v600 = vmax.f32 %v517, 0.0
    %v601 = vmax.f32 %v520, 0.0
    %v602 = vmax.f32 %v522, 0.0
    %v603 = vmax.f32 %v525, 0.0
    %v604 = vmax.f32 %v527, 0.0
    %v605 = vmax.f32 %v530, 0.0
    %v606 = vmax.f32 %v532, 0.0
    %v607 = vmax.f32 %v535, 0.0
    %v608 = vmax.f32 %v537, 0.0
    %v609 = vmax.f32 %v540, 0.0
    %v610 = vmax.f32 %v542, 0.0
    %v611 = vmax.f32 %v545, 0.0
    %v612 = vmax.f32 %v547, 0.0
    %vm613 = vcmask 64512
    %v614 = vsel %vm613, %v549, 0.0
    %v615 = vsel %vm613, %v550, 0.0
    %v616 = vadd.f32 %v614, %v615
    %v617 = vsel %vm613, %v551, 0.0
    %v618 = vadd.f32 %v616, %v617
    %v619 = vsel %vm613, %v552, 0.0
    %v620 = vadd.f32 %v618, %v619
    %v621 = vsel %vm613, %v553, 0.0
    %v622 = vadd.f32 %v620, %v621
    %v623 = vsel %vm613, %v554, 0.0
    %v624 = vadd.f32 %v622, %v623
    %v625 = vsel %vm613, %v555, 0.0
    %v626 = vadd.f32 %v624, %v625
    %v627 = vsel %vm613, %v556, 0.0
    %v628 = vadd.f32 %v626, %v627
    %v629 = vsel %vm613, %v557, 0.0
    %v630 = vadd.f32 %v628, %v629
    %v631 = vsel %vm613, %v558, 0.0
    %v632 = vadd.f32 %v630, %v631
    %v633 = vsel %vm613, %v559, 0.0
    %v634 = vadd.f32 %v632, %v633
    %v635 = vsel %vm613, %v560, 0.0
    %v636 = vadd.f32 %v634, %v635
    %v637 = vsel %vm613, %v561, 0.0
    %v638 = vadd.f32 %v636, %v637
    %v639 = vsel %vm613, %v562, 0.0
    %v640 = vadd.f32 %v638, %v639
    %v641 = vsel %vm613, %v563, 0.0
    %v642 = vadd.f32 %v640, %v641
    %v643 = vsel %vm613, %v564, 0.0
    %v644 = vadd.f32 %v642, %v643
    %v645 = vsel %vm613, %v565, 0.0
    %v646 = vadd.f32 %v644, %v645
    %v647 = vsel %vm613, %v566, 0.0
    %v648 = vadd.f32 %v646, %v647
    %v649 = vsel %vm613, %v567, 0.0
    %v650 = vadd.f32 %v648, %v649
    %v651 = vsel %vm613, %v568, 0.0
    %v652 = vadd.f32 %v650, %v651
    %v653 = vsel %vm613, %v569, 0.0
    %v654 = vadd.f32 %v652, %v653
    %v655 = vsel %vm613, %v570, 0.0
    %v656 = vadd.f32 %v654, %v655
    %v657 = vsel %vm613, %v571, 0.0
    %v658 = vadd.f32 %v656, %v657
    %v659 = vsel %vm613, %v572, 0.0
    %v660 = vadd.f32 %v658, %v659
    %v661 = vsel %vm613, %v573, 0.0
    %v662 = vadd.f32 %v660, %v661
    %v663 = vsel %vm613, %v574, 0.0
    %v664 = vadd.f32 %v662, %v663
    %v665 = vsel %vm613, %v575, 0.0
    %v666 = vadd.f32 %v664, %v665
    %v667 = vsel %vm613, %v576, 0.0
    %v668 = vadd.f32 %v666, %v667
    %v669 = vsel %vm613, %v577, 0.0
    %v670 = vadd.f32 %v668, %v669
    %v671 = vsel %vm613, %v578, 0.0
    %v672 = vadd.f32 %v670, %v671
    %v673 = vsel %vm613, %v579, 0.0
    %v674 = vadd.f32 %v672, %v673
    %v675 = vsel %vm613, %v580, 0.0
    %v676 = vadd.f32 %v674, %v675
    %v677 = vrot.slane %v676, 4
    %v678 = vadd.f32 %v676, %v677
    %v679 = vrot.slane %v678, 2
    %v680 = vadd.f32 %v678, %v679
    %v681 = vrot.slane %v680, 1
    %v682 = vadd.f32 %v680, %v681
    %v683 = vsel %vm613, %v581, 0.0
    %v684 = vsel %vm613, %v582, 0.0
    %v685 = vadd.f32 %v683, %v684
    %v686 = vsel %vm613, %v583, 0.0
    %v687 = vadd.f32 %v685, %v686
    %v688 = vsel %vm613, %v584, 0.0
    %v689 = vadd.f32 %v687, %v688
    %v690 = vsel %vm613, %v585, 0.0
    %v691 = vadd.f32 %v689, %v690
    %v692 = vsel %vm613, %v586, 0.0
    %v693 = vadd.f32 %v691, %v692
    %v694 = vsel %vm613, %v587, 0.0
    %v695 = vadd.f32 %v693, %v694
    %v696 = vsel %vm613, %v588, 0.0
    %v697 = vadd.f32 %v695, %v696
    %v698 = vsel %vm613, %v589, 0.0
    %v699 = vadd.f32 %v697, %v698
    %v700 = vsel %vm613, %v590, 0.0
    %v701 = vadd.f32 %v699, %v700
    %v702 = vsel %vm613, %v591, 0.0
    %v703 = vadd.f32 %v701, %v702
    %v704 = vsel %vm613, %v592, 0.0
    %v705 = vadd.f32 %v703, %v704
    %v706 = vsel %vm613, %v593, 0.0
    %v707 = vadd.f32 %v705, %v706
    %v708 = vsel %vm613, %v594, 0.0
    %v709 = vadd.f32 %v707, %v708
    %v710 = vsel %vm613, %v595, 0.0
    %v711 = vadd.f32 %v709, %v710
    %v712 = vsel %vm613, %v596, 0.0
    %v713 = vadd.f32 %v711, %v712
    %v714 = vsel %vm613, %v597, 0.0
    %v715 = vadd.f32 %v713, %v714
    %v716 = vsel %vm613, %v598, 0.0
    %v717 = vadd.f32 %v715, %v716
    %v718 = vsel %vm613, %v599, 0.0
    %v719 = vadd.f32 %v717, %v718
    %v720 = vsel %vm613, %v600, 0.0
    %v721 = vadd.f32 %v719, %v720
    %v722 = vsel %vm613, %v601, 0.0
    %v723 = vadd.f32 %v721, %v722
    %v724 = vsel %vm613, %v602, 0.0
    %v725 = vadd.f32 %v723, %v724
    %v726 = vsel %vm613, %v603, 0.0
    %v727 = vadd.f32 %v725, %v726
    %v728 = vsel %vm613, %v604, 0.0
    %v729 = vadd.f32 %v727, %v728
    %v730 = vsel %vm613, %v605, 0.0
    %v731 = vadd.f32 %v729, %v730
    %v732 = vsel %vm613, %v606, 0.0
    %v733 = vadd.f32 %v731, %v732
    %v734 = vsel %vm613, %v607, 0.0
    %v735 = vadd.f32 %v733, %v734
    %v736 = vsel %vm613, %v608, 0.0
    %v737 = vadd.f32 %v735, %v736
    %v738 = vsel %vm613, %v609, 0.0
    %v739 = vadd.f32 %v737, %v738
    %v740 = vsel %vm613, %v610, 0.0
    %v741 = vadd.f32 %v739, %v740
    %v742 = vsel %vm613, %v611, 0.0
    %v743 = vadd.f32 %v741, %v742
    %v744 = vsel %vm613, %v612, 0.0
    %v745 = vadd.f32 %v743, %v744
    %v746 = vrot.slane %v745, 4
    %v747 = vadd.f32 %v745, %v746
    %v748 = vrot.slane %v747, 2
    %v749 = vadd.f32 %v747, %v748
    %v750 = vrot.slane %v749, 1
    %v751 = vadd.f32 %v749, %v750
    %v752 = vmul.f32 %v682, 0.00390625
    %v753 = vmul.f32 %v751, 0.00390625
    %v754 = vpack.c.bf16 %v752, %v752
    %v755 = vpack.c.bf16 %v753, %v753
    %v756 = vld [vmem:[%s3] sm:$0xf]
    %v759 = vunpack.c.l.b16 %v754
    %v760 = vunpack.c.l.b16 %v755
    %vm761 = vcmask 1041409
    %v762 = vsel %vm761, %v760, %v759
    %v763 = vpack.c.b16 %v762, %v762
    %764 = vrot.lane.b32.xlu0 %v102, 120
    %v765 = vpop.permute.xlu0 %764
    %v768 = vsel %vm613, %v763, 0
    %vm770 = vcmask 1043456
    %v772 = vsel %vm770, %v756, 0
    %774 = vmatpush.bf16.msra.mxu0 0
    %775 = vmatpush.bf16.msra.mxu0 0
    %776 = vmatpush.bf16.msra.mxu0 0
    %777 = vmatpush.bf16.msra.mxu0 0
    %778 = vmatpush.bf16.msra.mxu0 0
    %779 = vmatpush.bf16.msra.mxu0 0
    %780 = vmatpush.bf16.msra.mxu0 0
    %781 = vmatpush.bf16.msra.mxu0 %v772
    %782 = vmatmul.bf16.gmra.mxu0 %v768
    %v783 = vpop.f32.mrf.mxu0
    %v784 = vadd.f32 %v765, %v783
    %v785 = vpop.f32.mrf.mxu0
    %786 = vdwg.mxu0
    %v787 = vmax.f32 %v784, 0.0
    %v788 = vld [vmem:[%s1] sm:$0x1]
    %v789 = vld [vmem:[%s4] sm:$0xf]
    %790 = vrot.lane.b32.xlu0 %v102, 104
    %v791 = vpop.permute.xlu0 %790
    %v794 = vsel %vm613, %v788, 0
    %v797 = vsel %vm770, %v789, 0
    %799 = vmatpush.bf16.msra.mxu0 0
    %800 = vmatpush.bf16.msra.mxu0 0
    %801 = vmatpush.bf16.msra.mxu0 0
    %802 = vmatpush.bf16.msra.mxu0 0
    %803 = vmatpush.bf16.msra.mxu0 0
    %804 = vmatpush.bf16.msra.mxu0 0
    %805 = vmatpush.bf16.msra.mxu0 0
    %806 = vmatpush.bf16.msra.mxu0 %v797
    %807 = vmatmul.bf16.gmra.mxu0 %v794
    %v808 = vpop.f32.mrf.mxu0
    %v809 = vadd.f32 %v791, %v808
    %v810 = vpop.f32.mrf.mxu0
    %811 = vdwg.mxu0
    %v812 = vmax.f32 %v809, 0.0
    %v813 = vpack.c.bf16 %v787, %v787
    %v814 = vld [vmem:[%s5] sm:$0xf]
    %v815 = vld [vmem:[%s5 + $0x4] sm:$0xf]
    %v816 = vpack.c.bf16 %v812, %v812
    %v817 = vld [vmem:[%s6] sm:$0xf]
    %v818 = vld [vmem:[%s6 + $0x4] sm:$0xf]
    %v821 = vunpack.c.l.b16 %v817
    %v822 = vunpack.c.l.b16 %v818
    %v823 = vpack.c.b16 %v822, %v821
    %vm825 = vcmask 130048
    %v827 = vsel %vm825, %v816, 0
    %829 = vmatpush.bf16.msra.mxu0 0
    %830 = vmatpush.bf16.msra.mxu0 0
    %831 = vmatpush.bf16.msra.mxu0 0
    %832 = vmatpush.bf16.msra.mxu0 0
    %833 = vmatpush.bf16.msra.mxu0 0
    %834 = vmatpush.bf16.msra.mxu0 0
    %835 = vmatpush.bf16.msra.mxu0 0
    %836 = vmatpush.bf16.msra.mxu0 %v823
    %837 = vmatmul.bf16.gmra.mxu0 %v827
    %v838 = vpop.f32.mrf.mxu0
    %v839 = vadd.f32 0.0, %v838
    %v840 = vpop.f32.mrf.mxu0
    %841 = vdwg.mxu0
    %v844 = vunpack.c.l.b16 %v814
    %v845 = vunpack.c.l.b16 %v815
    %v846 = vpack.c.b16 %v845, %v844
    %v849 = vsel %vm825, %v813, 0
    %851 = vmatpush.bf16.msra.mxu0 0
    %852 = vmatpush.bf16.msra.mxu0 0
    %853 = vmatpush.bf16.msra.mxu0 0
    %854 = vmatpush.bf16.msra.mxu0 0
    %855 = vmatpush.bf16.msra.mxu0 0
    %856 = vmatpush.bf16.msra.mxu0 0
    %857 = vmatpush.bf16.msra.mxu0 0
    %858 = vmatpush.bf16.msra.mxu0 %v846
    %859 = vmatmul.bf16.gmra.mxu0 %v849
    %v860 = vpop.f32.mrf.mxu0
    %v861 = vadd.f32 %v839, %v860
    %v862 = vpop.f32.mrf.mxu0
    %863 = vdwg.mxu0
    %864 = vrot.lane.b32.xlu0 %v102, 88
    %v865 = vpop.permute.xlu0 %864
    %v867 = vadd.f32 %v861, %v865
    %vm868 = vcmask 58368
    %869 = vst.msk [vmem:[#allocation2] sm:$0x3] %vm868, %v867
    // Predicated region
    $region34: #{multimodal_forward.1} parent=1 // pred_check
      _
    $region35: #{multimodal_forward.1} parent=1 // pred_check_branch
      %871 = sbr.rel (0) target = $region37
    $region36: #{multimodal_forward.1} parent=1 // pred_region
      %873 = vsyncadd [#allocation3], 0
      %s875 = sshll.u32 [#allocation2], 4
      %s876 = int_to_ptr.vmem [resolvable:$true] %s875
      %s877 = sshll.u32 %s8, 4
      %s878 = int_to_ptr.hbm [resolvable:$true] %s877
      %880 = dma.vmem_to_hbm [thread:$0]  %s876, 32, %s878, [#allocation3]
    $region37: #{multimodal_forward.1} parent=1 // pred_fallthru
      _
    // Predicated region
    $region38: #{multimodal_forward.1} parent=1 // pred_check
      _
    $region39: #{multimodal_forward.1} parent=1 // pred_check_branch
      %882 = sbr.rel (0) target = $region41
    $region40: #{multimodal_forward.1} parent=1 // pred_region
      %884 = dma.done [#allocation3], 32
    $region41: #{multimodal_forward.1} parent=1 // pred_fallthru
      _
    %885 = vsyncpa [#allocation3], 1

</llo_original>
